<compile_context>
chip_gen: v7x
topology: tpu7x:2x2x1
jax: 0.10.0
libtpu: 0.0.40
codegen_flags: <defaults>
</compile_context>

<pallas_src>
import functools

import jax
import jax.numpy as jnp
from jax.experimental import pallas as pl
from jax.experimental.pallas import tpu as pltpu

HIDDEN = 32
LN_EPS = 1e-5
OUT_PAD = 128            # lane-dense output width (>= action_dim)
MAX_BATCH_TILE = 1024    # rows per grid step (well within VMEM on v5e/v6e/v7x)


def _round_up(n, m):
    return ((n + m - 1) // m) * m


def _layernorm(h, gamma, beta):
    # h: (TB, H) f32; gamma/beta: (1, H) f32. Biased variance (torch semantics).
    mean = jnp.mean(h, axis=-1, keepdims=True)
    centered = h - mean
    var = jnp.mean(centered * centered, axis=-1, keepdims=True)
    inv = jax.lax.rsqrt(var + LN_EPS)
    return centered * inv * gamma + beta


def actor_kernel(x_ref,
                 w1_ref, b1_ref, g1_ref, be1_ref,
                 w2_ref, b2_ref, g2_ref, be2_ref,
                 w3_ref, b3_ref,
                 o_ref):
    x = x_ref[...].astype(jnp.float32)        # (TB, S)

    # Hoist all resident small params once.
    w1 = w1_ref[...]                          # (S, H)        f32
    b1 = b1_ref[...]                          # (1, H)        f32
    g1, be1 = g1_ref[...], be1_ref[...]       # (1, H)        f32
    b2 = b2_ref[...]                          # (1, H)        f32
    g2, be2 = g2_ref[...], be2_ref[...]       # (1, H)        f32
    b3 = b3_ref[...]                          # (1, OUT_PAD)  f32

    # fc1: K = state_dim is tiny -> VPU broadcast-FMAs, keep it off the MXU.
    s_dim = x.shape[1]
    h = x[:, 0:1] * w1[0:1, :]
    for k in range(1, s_dim):                 # static, tiny trip count
        h = h + x[:, k:k + 1] * w1[k:k + 1, :]
    h = h + b1

    # ln1 -> relu (f32)
    h = jnp.maximum(_layernorm(h, g1, be1), 0.0)

    # fc2 (32x32) on the MXU: bf16 operands, f32 accumulation.
    h = jnp.dot(h.astype(jnp.bfloat16), w2_ref[...],
                preferred_element_type=jnp.float32) + b2

    # ln2 -> relu (f32)
    h = jnp.maximum(_layernorm(h, g2, be2), 0.0)

    # fc3 (32 -> OUT_PAD zero-padded cols): lane-dense output block, unmasked store.
    y = jnp.dot(h.astype(jnp.bfloat16), w3_ref[...],
                preferred_element_type=jnp.float32) + b3
    o_ref[...] = jnp.tanh(y).astype(o_ref.dtype)


@functools.partial(jax.jit, static_argnames=("batch_tile",))
def actor_forward(x, params, batch_tile=None):
    (w1, b1, g1, be1, w2, b2, g2, be2, w3, b3) = params
    batch, state_dim = x.shape
    hidden = w1.shape[1]
    action_dim = w3.shape[1]

    # Batch tiling (rows per grid step), padded so the grid divides evenly.
    if batch_tile is None:
        tb = min(MAX_BATCH_TILE, _round_up(batch, 8))
    else:
        tb = _round_up(int(batch_tile), 8)
    batch_pad = _round_up(batch, tb)
    if batch_pad != batch:
        x = jnp.pad(x, ((0, batch_pad - batch), (0, 0)))

    # Lane-dense fc3: zero-pad weight/bias columns to OUT_PAD.
    w3p = jnp.zeros((hidden, OUT_PAD), jnp.float32).at[:, :action_dim].set(w3)
    b3p = jnp.zeros((1, OUT_PAD), jnp.float32).at[:, :action_dim].set(b3)

    # bf16 MXU operands (accumulation stays f32 inside the kernel).
    w2_bf = w2.astype(jnp.bfloat16)
    w3_bf = w3p.astype(jnp.bfloat16)

    grid = (batch_pad // tb,)

    def tile_spec(feat):
        return pl.BlockSpec((tb, feat), lambda i: (i, 0))

    def resident_spec(shape):
        return pl.BlockSpec(shape, lambda i: (0, 0))

    args = (x, w1, b1, g1, be1, w2_bf, b2, g2, be2, w3_bf, b3p)
    in_specs = [tile_spec(state_dim)] + [resident_spec(a.shape) for a in args[1:]]

    flops_per_row = 2 * (state_dim * hidden + hidden * hidden + hidden * OUT_PAD) \
        + 16 * hidden
    param_bytes = sum(int(a.size) * a.dtype.itemsize for a in args[1:])
    cost = pl.CostEstimate(
        flops=int(batch_pad * flops_per_row),
        transcendentals=int(batch_pad * (2 + OUT_PAD)),
        bytes_accessed=int(x.size) * 4 + int(batch_pad * OUT_PAD) * 4 + param_bytes,
    )

    out = pl.pallas_call(
        actor_kernel,
        out_shape=jax.ShapeDtypeStruct((batch_pad, OUT_PAD), jnp.float32),
        grid=grid,
        in_specs=in_specs,
        out_specs=tile_spec(OUT_PAD),
        compiler_params=pltpu.CompilerParams(
            dimension_semantics=("parallel",),
        ),
        cost_estimate=cost,
    )(*args)
    return out[:batch, :action_dim]


def init_actor_params(key, state_dim, action_dim):
    """nn.Linear default init (uniform +-1/sqrt(fan_in)), LayerNorm default
    (gamma=1, beta=0). Weights stored transposed: (in_features, out_features)."""
    k1, k2, k3, k4, k5, k6 = jax.random.split(key, 6)

    def lin(kw, kb, fan_in, fan_out):
        bound = 1.0 / jnp.sqrt(float(fan_in))
        w = jax.random.uniform(kw, (fan_in, fan_out), jnp.float32, -bound, bound)
        b = jax.random.uniform(kb, (1, fan_out), jnp.float32, -bound, bound)
        return w, b

    w1, b1 = lin(k1, k2, state_dim, HIDDEN)
    w2, b2 = lin(k3, k4, HIDDEN, HIDDEN)
    w3, b3 = lin(k5, k6, HIDDEN, action_dim)
    g1 = jnp.ones((1, HIDDEN), jnp.float32)
    be1 = jnp.zeros((1, HIDDEN), jnp.float32)
    g2 = jnp.ones((1, HIDDEN), jnp.float32)
    be2 = jnp.zeros((1, HIDDEN), jnp.float32)
    return (w1, b1, g1, be1, w2, b2, g2, be2, w3, b3)


def _ln_ref(h, g, b):
    m = jnp.mean(h, -1, keepdims=True)
    c = h - m
    v = jnp.mean(c * c, -1, keepdims=True)
    return c * jax.lax.rsqrt(v + LN_EPS) * g + b


def actor_reference(x, params):
    # Pure-f32 reference with exact PyTorch-module semantics.
    (w1, b1, g1, be1, w2, b2, g2, be2, w3, b3) = params
    h = jnp.maximum(_ln_ref(x @ w1 + b1, g1, be1), 0.0)
    h = jnp.maximum(_ln_ref(h @ w2 + b2, g2, be2), 0.0)
    return jnp.tanh(h @ w3 + b3)


def actor_reference_matched(x, params):
    # Same math but mirrors the kernel's bf16 MXU operands (f32 accumulation),
    # so the Pallas output can be checked against it with a tight tolerance.
    (w1, b1, g1, be1, w2, b2, g2, be2, w3, b3) = params

    def bdot(a, w):
        return jnp.dot(a.astype(jnp.bfloat16), w.astype(jnp.bfloat16),
                       preferred_element_type=jnp.float32)

    h = jnp.maximum(_ln_ref(x @ w1 + b1, g1, be1), 0.0)
    h = jnp.maximum(_ln_ref(bdot(h, w2) + b2, g2, be2), 0.0)
    return jnp.tanh(bdot(h, w3) + b3)


if __name__ == "__main__":
    # MountainCarContinuous-like dims: state_dim=2, action_dim=1.
    state_dim, action_dim, batch = 2, 1, 8
    key = jax.random.PRNGKey(0)
    kx, kx2, kp = jax.random.split(key, 3)

    x = jax.random.normal(kx, (batch, state_dim), jnp.float32)
    params = init_actor_params(kp, state_dim, action_dim)

    out = actor_forward(x, params)
    jax.block_until_ready(out)
    assert out.shape == (batch, action_dim)

    # Tight check vs precision-matched reference; loose check vs pure-f32 spec.
    assert jnp.allclose(out, actor_reference_matched(x, params), atol=1e-3, rtol=1e-3)
    assert jnp.allclose(out, actor_reference(x, params), atol=3e-2, rtol=3e-2)

    # Exercise the multi-tile grid + batch-padding path with a small forced tile.
    x2 = jax.random.normal(kx2, (200, state_dim), jnp.float32)
    out2 = actor_forward(x2, params, batch_tile=64)
    jax.block_until_ready(out2)
    assert out2.shape == (200, action_dim)
    assert jnp.allclose(out2, actor_reference_matched(x2, params), atol=1e-3, rtol=1e-3)

    print("KERNEL_OK")
</pallas_src>

<mosaic_0001>
module attributes {stable_mosaic.version = 11 : i64} {
  func.func @actor_kernel(%arg0: i32, %arg1: memref<8x2xf32, #tpu.memory_space<vmem>>, %arg2: memref<2x32xf32, #tpu.memory_space<vmem>>, %arg3: memref<1x32xf32, #tpu.memory_space<vmem>>, %arg4: memref<1x32xf32, #tpu.memory_space<vmem>>, %arg5: memref<1x32xf32, #tpu.memory_space<vmem>>, %arg6: memref<32x32xbf16, #tpu.memory_space<vmem>>, %arg7: memref<1x32xf32, #tpu.memory_space<vmem>>, %arg8: memref<1x32xf32, #tpu.memory_space<vmem>>, %arg9: memref<1x32xf32, #tpu.memory_space<vmem>>, %arg10: memref<32x128xbf16, #tpu.memory_space<vmem>>, %arg11: memref<1x128xf32, #tpu.memory_space<vmem>>, %arg12: memref<8x128xf32, #tpu.memory_space<vmem>>) attributes {dimension_semantics = [#tpu.dimension_semantics<parallel>], iteration_bounds = array<i64: 1>, scalar_prefetch = 0 : i64, scratch_operands = 0 : i64, tpu.core_type = #tpu.core_type<tc>, window_params = [{transform_indices = @transform_0, window_bounds = array<i64: 8, 2>}, {pipeline_mode = #tpu.pipeline_mode<synchronous>, transform_indices = @transform_1, window_bounds = array<i64: 2, 32>}, {pipeline_mode = #tpu.pipeline_mode<synchronous>, transform_indices = @transform_2, window_bounds = array<i64: 1, 32>}, {pipeline_mode = #tpu.pipeline_mode<synchronous>, transform_indices = @transform_3, window_bounds = array<i64: 1, 32>}, {pipeline_mode = #tpu.pipeline_mode<synchronous>, transform_indices = @transform_4, window_bounds = array<i64: 1, 32>}, {pipeline_mode = #tpu.pipeline_mode<synchronous>, transform_indices = @transform_5, window_bounds = array<i64: 32, 32>}, {pipeline_mode = #tpu.pipeline_mode<synchronous>, transform_indices = @transform_6, window_bounds = array<i64: 1, 32>}, {pipeline_mode = #tpu.pipeline_mode<synchronous>, transform_indices = @transform_7, window_bounds = array<i64: 1, 32>}, {pipeline_mode = #tpu.pipeline_mode<synchronous>, transform_indices = @transform_8, window_bounds = array<i64: 1, 32>}, {pipeline_mode = #tpu.pipeline_mode<synchronous>, transform_indices = @transform_9, window_bounds = array<i64: 32, 128>}, {pipeline_mode = #tpu.pipeline_mode<synchronous>, transform_indices = @transform_10, window_bounds = array<i64: 1, 128>}, {transform_indices = @transform_11, window_bounds = array<i64: 8, 128>}]} {
    %c0 = arith.constant 0 : index
    %c0_0 = arith.constant 0 : index
    %0 = vector.load %arg1[%c0, %c0_0] : memref<8x2xf32, #tpu.memory_space<vmem>>, vector<8x2xf32>
    %c0_1 = arith.constant 0 : index
    %c0_2 = arith.constant 0 : index
    %1 = vector.load %arg2[%c0_1, %c0_2] : memref<2x32xf32, #tpu.memory_space<vmem>>, vector<2x32xf32>
    %c0_3 = arith.constant 0 : index
    %c0_4 = arith.constant 0 : index
    %2 = vector.load %arg3[%c0_3, %c0_4] : memref<1x32xf32, #tpu.memory_space<vmem>>, vector<1x32xf32>
    %c0_5 = arith.constant 0 : index
    %c0_6 = arith.constant 0 : index
    %3 = vector.load %arg4[%c0_5, %c0_6] : memref<1x32xf32, #tpu.memory_space<vmem>>, vector<1x32xf32>
    %c0_7 = arith.constant 0 : index
    %c0_8 = arith.constant 0 : index
    %4 = vector.load %arg5[%c0_7, %c0_8] : memref<1x32xf32, #tpu.memory_space<vmem>>, vector<1x32xf32>
    %c0_9 = arith.constant 0 : index
    %c0_10 = arith.constant 0 : index
    %5 = vector.load %arg7[%c0_9, %c0_10] : memref<1x32xf32, #tpu.memory_space<vmem>>, vector<1x32xf32>
    %c0_11 = arith.constant 0 : index
    %c0_12 = arith.constant 0 : index
    %6 = vector.load %arg8[%c0_11, %c0_12] : memref<1x32xf32, #tpu.memory_space<vmem>>, vector<1x32xf32>
    %c0_13 = arith.constant 0 : index
    %c0_14 = arith.constant 0 : index
    %7 = vector.load %arg9[%c0_13, %c0_14] : memref<1x32xf32, #tpu.memory_space<vmem>>, vector<1x32xf32>
    %c0_15 = arith.constant 0 : index
    %c0_16 = arith.constant 0 : index
    %8 = vector.load %arg11[%c0_15, %c0_16] : memref<1x128xf32, #tpu.memory_space<vmem>>, vector<1x128xf32>
    %9 = vector.extract_strided_slice %0 {offsets = [0, 0], sizes = [8, 1], strides = [1, 1]} : vector<8x2xf32> to vector<8x1xf32>
    %10 = vector.extract_strided_slice %1 {offsets = [0, 0], sizes = [1, 32], strides = [1, 1]} : vector<2x32xf32> to vector<1x32xf32>
    %11 = vector.broadcast %9 : vector<8x1xf32> to vector<8x32xf32>
    %12 = vector.broadcast %10 : vector<1x32xf32> to vector<8x32xf32>
    %13 = arith.mulf %11, %12 : vector<8x32xf32>
    %14 = vector.extract_strided_slice %0 {offsets = [0, 1], sizes = [8, 1], strides = [1, 1]} : vector<8x2xf32> to vector<8x1xf32>
    %15 = vector.extract_strided_slice %1 {offsets = [1, 0], sizes = [1, 32], strides = [1, 1]} : vector<2x32xf32> to vector<1x32xf32>
    %16 = vector.broadcast %14 : vector<8x1xf32> to vector<8x32xf32>
    %17 = vector.broadcast %15 : vector<1x32xf32> to vector<8x32xf32>
    %18 = arith.mulf %16, %17 : vector<8x32xf32>
    %19 = arith.addf %13, %18 : vector<8x32xf32>
    %20 = vector.broadcast %2 : vector<1x32xf32> to vector<8x32xf32>
    %21 = arith.addf %19, %20 : vector<8x32xf32>
    %cst = arith.constant dense<0.000000e+00> : vector<8xf32>
    %22 = vector.multi_reduction <add>, %21, %cst [1] : vector<8x32xf32> to vector<8xf32>
    %23 = vector.shape_cast %22 : vector<8xf32> to vector<8x1xf32>
    %cst_17 = arith.constant 3.200000e+01 : f32
    %24 = vector.broadcast %cst_17 : f32 to vector<8x1xf32>
    %25 = arith.divf %23, %24 : vector<8x1xf32>
    %26 = vector.broadcast %25 : vector<8x1xf32> to vector<8x32xf32>
    %27 = arith.subf %21, %26 : vector<8x32xf32>
    %28 = arith.mulf %27, %27 : vector<8x32xf32>
    %cst_18 = arith.constant dense<0.000000e+00> : vector<8xf32>
    %29 = vector.multi_reduction <add>, %28, %cst_18 [1] : vector<8x32xf32> to vector<8xf32>
    %30 = vector.shape_cast %29 : vector<8xf32> to vector<8x1xf32>
    %cst_19 = arith.constant 3.200000e+01 : f32
    %31 = vector.broadcast %cst_19 : f32 to vector<8x1xf32>
    %32 = arith.divf %30, %31 : vector<8x1xf32>
    %cst_20 = arith.constant 9.99999974E-6 : f32
    %33 = vector.broadcast %cst_20 : f32 to vector<8x1xf32>
    %34 = arith.addf %32, %33 : vector<8x1xf32>
    %35 = math.rsqrt %34 : vector<8x1xf32>
    %36 = vector.broadcast %35 : vector<8x1xf32> to vector<8x32xf32>
    %37 = arith.mulf %27, %36 : vector<8x32xf32>
    %38 = vector.broadcast %3 : vector<1x32xf32> to vector<8x32xf32>
    %39 = arith.mulf %37, %38 : vector<8x32xf32>
    %40 = vector.broadcast %4 : vector<1x32xf32> to vector<8x32xf32>
    %41 = arith.addf %39, %40 : vector<8x32xf32>
    %cst_21 = arith.constant 0.000000e+00 : f32
    %42 = vector.broadcast %cst_21 : f32 to vector<8x32xf32>
    %43 = arith.maximumf %41, %42 : vector<8x32xf32>
    %44 = arith.truncf %43 : vector<8x32xf32> to vector<8x32xbf16>
    %c0_22 = arith.constant 0 : index
    %c0_23 = arith.constant 0 : index
    %45 = vector.load %arg6[%c0_22, %c0_23] : memref<32x32xbf16, #tpu.memory_space<vmem>>, vector<32x32xbf16>
    %cst_24 = arith.constant dense<0.000000e+00> : vector<8x32xf32>
    %46 = tpu.matmul %44, %45, %cst_24 {dimension_numbers = #tpu.dot_dimension_numbers<[1], [0], [0], [1], [0, 0, 1, 1], [], []>} : vector<8x32xbf16>, vector<32x32xbf16>, vector<8x32xf32> -> vector<8x32xf32>
    %47 = vector.broadcast %5 : vector<1x32xf32> to vector<8x32xf32>
    %48 = arith.addf %46, %47 : vector<8x32xf32>
    %cst_25 = arith.constant dense<0.000000e+00> : vector<8xf32>
    %49 = vector.multi_reduction <add>, %48, %cst_25 [1] : vector<8x32xf32> to vector<8xf32>
    %50 = vector.shape_cast %49 : vector<8xf32> to vector<8x1xf32>
    %cst_26 = arith.constant 3.200000e+01 : f32
    %51 = vector.broadcast %cst_26 : f32 to vector<8x1xf32>
    %52 = arith.divf %50, %51 : vector<8x1xf32>
    %53 = vector.broadcast %52 : vector<8x1xf32> to vector<8x32xf32>
    %54 = arith.subf %48, %53 : vector<8x32xf32>
    %55 = arith.mulf %54, %54 : vector<8x32xf32>
    %cst_27 = arith.constant dense<0.000000e+00> : vector<8xf32>
    %56 = vector.multi_reduction <add>, %55, %cst_27 [1] : vector<8x32xf32> to vector<8xf32>
    %57 = vector.shape_cast %56 : vector<8xf32> to vector<8x1xf32>
    %cst_28 = arith.constant 3.200000e+01 : f32
    %58 = vector.broadcast %cst_28 : f32 to vector<8x1xf32>
    %59 = arith.divf %57, %58 : vector<8x1xf32>
    %cst_29 = arith.constant 9.99999974E-6 : f32
    %60 = vector.broadcast %cst_29 : f32 to vector<8x1xf32>
    %61 = arith.addf %59, %60 : vector<8x1xf32>
    %62 = math.rsqrt %61 : vector<8x1xf32>
    %63 = vector.broadcast %62 : vector<8x1xf32> to vector<8x32xf32>
    %64 = arith.mulf %54, %63 : vector<8x32xf32>
    %65 = vector.broadcast %6 : vector<1x32xf32> to vector<8x32xf32>
    %66 = arith.mulf %64, %65 : vector<8x32xf32>
    %67 = vector.broadcast %7 : vector<1x32xf32> to vector<8x32xf32>
    %68 = arith.addf %66, %67 : vector<8x32xf32>
    %cst_30 = arith.constant 0.000000e+00 : f32
    %69 = vector.broadcast %cst_30 : f32 to vector<8x32xf32>
    %70 = arith.maximumf %68, %69 : vector<8x32xf32>
    %71 = arith.truncf %70 : vector<8x32xf32> to vector<8x32xbf16>
    %c0_31 = arith.constant 0 : index
    %c0_32 = arith.constant 0 : index
    %72 = vector.load %arg10[%c0_31, %c0_32] : memref<32x128xbf16, #tpu.memory_space<vmem>>, vector<32x128xbf16>
    %cst_33 = arith.constant dense<0.000000e+00> : vector<8x128xf32>
    %73 = tpu.matmul %71, %72, %cst_33 {dimension_numbers = #tpu.dot_dimension_numbers<[1], [0], [0], [1], [0, 0, 1, 1], [], []>} : vector<8x32xbf16>, vector<32x128xbf16>, vector<8x128xf32> -> vector<8x128xf32>
    %74 = vector.broadcast %8 : vector<1x128xf32> to vector<8x128xf32>
    %75 = arith.addf %73, %74 : vector<8x128xf32>
    %76 = math.tanh %75 : vector<8x128xf32>
    %c0_34 = arith.constant 0 : index
    %c0_35 = arith.constant 0 : index
    %77 = vector.load %arg12[%c0_34, %c0_35] : memref<8x128xf32, #tpu.memory_space<vmem>>, vector<8x128xf32>
    tpu.vector_store %arg12[%c0_34, %c0_35], %76 {strides = array<i32>} : memref<8x128xf32, #tpu.memory_space<vmem>>, vector<8x128xf32>,
    return
  }
  func.func @transform_0(%arg0: i32) -> (i32, i32) {
    %c0_i32 = arith.constant 0 : i32
    %c0_i32_0 = arith.constant 0 : i32
    return %arg0, %c0_i32 : i32, i32
  }
  func.func @transform_1(%arg0: i32) -> (i32, i32) {
    %c0_i32 = arith.constant 0 : i32
    %c0_i32_0 = arith.constant 0 : i32
    %c0_i32_1 = arith.constant 0 : i32
    return %c0_i32, %c0_i32_0 : i32, i32
  }
  func.func @transform_2(%arg0: i32) -> (i32, i32) {
    %c0_i32 = arith.constant 0 : i32
    %c0_i32_0 = arith.constant 0 : i32
    %c0_i32_1 = arith.constant 0 : i32
    return %c0_i32, %c0_i32_0 : i32, i32
  }
  func.func @transform_3(%arg0: i32) -> (i32, i32) {
    %c0_i32 = arith.constant 0 : i32
    %c0_i32_0 = arith.constant 0 : i32
    %c0_i32_1 = arith.constant 0 : i32
    return %c0_i32, %c0_i32_0 : i32, i32
  }
  func.func @transform_4(%arg0: i32) -> (i32, i32) {
    %c0_i32 = arith.constant 0 : i32
    %c0_i32_0 = arith.constant 0 : i32
    %c0_i32_1 = arith.constant 0 : i32
    return %c0_i32, %c0_i32_0 : i32, i32
  }
  func.func @transform_5(%arg0: i32) -> (i32, i32) {
    %c0_i32 = arith.constant 0 : i32
    %c0_i32_0 = arith.constant 0 : i32
    %c0_i32_1 = arith.constant 0 : i32
    return %c0_i32, %c0_i32_0 : i32, i32
  }
  func.func @transform_6(%arg0: i32) -> (i32, i32) {
    %c0_i32 = arith.constant 0 : i32
    %c0_i32_0 = arith.constant 0 : i32
    %c0_i32_1 = arith.constant 0 : i32
    return %c0_i32, %c0_i32_0 : i32, i32
  }
  func.func @transform_7(%arg0: i32) -> (i32, i32) {
    %c0_i32 = arith.constant 0 : i32
    %c0_i32_0 = arith.constant 0 : i32
    %c0_i32_1 = arith.constant 0 : i32
    return %c0_i32, %c0_i32_0 : i32, i32
  }
  func.func @transform_8(%arg0: i32) -> (i32, i32) {
    %c0_i32 = arith.constant 0 : i32
    %c0_i32_0 = arith.constant 0 : i32
    %c0_i32_1 = arith.constant 0 : i32
    return %c0_i32, %c0_i32_0 : i32, i32
  }
  func.func @transform_9(%arg0: i32) -> (i32, i32) {
    %c0_i32 = arith.constant 0 : i32
    %c0_i32_0 = arith.constant 0 : i32
    %c0_i32_1 = arith.constant 0 : i32
    return %c0_i32, %c0_i32_0 : i32, i32
  }
  func.func @transform_10(%arg0: i32) -> (i32, i32) {
    %c0_i32 = arith.constant 0 : i32
    %c0_i32_0 = arith.constant 0 : i32
    %c0_i32_1 = arith.constant 0 : i32
    return %c0_i32, %c0_i32_0 : i32, i32
  }
  func.func @transform_11(%arg0: i32) -> (i32, i32) {
    %c0_i32 = arith.constant 0 : i32
    %c0_i32_0 = arith.constant 0 : i32
    return %arg0, %c0_i32 : i32, i32
  }
}

</mosaic_0001>

<llo_original>
// kernel: actor_forward.1
$region0: #{actor_forward.1}
  #allocation0 [shape = 'u32[]', space=smem, size = 0x4, offset = 0x4, fixed_abs, tag = 'smem constant byte address 0x4 - core index']
  #allocation1 [shape = 'u32[144,128]{1,0:T(1,128)}', space=vmem, size = 0x12000, scoped, tag = 'internal scratch']
  %s0 = inlined_call_operand.vmem [shape: f32[8,2], index: 0, kind: input, shape index: {}]
  %s1 = inlined_call_operand.vmem [shape: f32[2,32], index: 1, kind: input, shape index: {}]
  %s2 = inlined_call_operand.vmem [shape: f32[1,32], index: 2, kind: input, shape index: {}]
  %s3 = inlined_call_operand.vmem [shape: f32[1,32], index: 3, kind: input, shape index: {}]
  %s4 = inlined_call_operand.vmem [shape: f32[1,32], index: 4, kind: input, shape index: {}]
  %s5 = inlined_call_operand.vmem [shape: bf16[32,32], index: 5, kind: input, shape index: {}]
  %s6 = inlined_call_operand.vmem [shape: f32[1,32], index: 6, kind: input, shape index: {}]
  %s7 = inlined_call_operand.vmem [shape: f32[1,32], index: 7, kind: input, shape index: {}]
  %s8 = inlined_call_operand.vmem [shape: f32[1,32], index: 8, kind: input, shape index: {}]
  %s9 = inlined_call_operand.vmem [shape: bf16[32,128], index: 9, kind: input, shape index: {}]
  %s10 = inlined_call_operand.vmem [shape: f32[1,128], index: 10, kind: input, shape index: {}]
  %s11 = inlined_call_operand.vmem [shape: f32[8,128], index: 11, kind: output, shape index: {}]
  %s12 = sld [smem:[#allocation0]]
  $region54: #{actor_forward.1} parent=0
    _
  %s14 = ssub.s32 1, %s12
  %s15 = scalar_select 0, %s14, %s12
  // Predicated region
  $region2: #{actor_forward.1} parent=0 // pred_check
    _
  $region3: #{actor_forward.1} parent=0 // pred_check_branch
    %17 = sbr.rel (0) target = $region5
  $region4: #{actor_forward.1} parent=0 // pred_region
    _
  $region5: #{actor_forward.1} parent=0 // pred_fallthru
    _
  // Predicated region
  $region6: #{actor_forward.1} parent=0 // pred_check
    _
  $region7: #{actor_forward.1} parent=0 // pred_check_branch
    %19 = sbr.rel (0) target = $region9
  $region8: #{actor_forward.1} parent=0 // pred_region
    _
  $region9: #{actor_forward.1} parent=0 // pred_fallthru
    _
  // Predicated region
  $region10: #{actor_forward.1} parent=0 // pred_check
    _
  $region11: #{actor_forward.1} parent=0 // pred_check_branch
    %21 = sbr.rel (0) target = $region13
  $region12: #{actor_forward.1} parent=0 // pred_region
    _
  $region13: #{actor_forward.1} parent=0 // pred_fallthru
    _
  // Predicated region
  $region14: #{actor_forward.1} parent=0 // pred_check
    _
  $region15: #{actor_forward.1} parent=0 // pred_check_branch
    %23 = sbr.rel (0) target = $region17
  $region16: #{actor_forward.1} parent=0 // pred_region
    _
  $region17: #{actor_forward.1} parent=0 // pred_fallthru
    _
  // Predicated region
  $region18: #{actor_forward.1} parent=0 // pred_check
    _
  $region19: #{actor_forward.1} parent=0 // pred_check_branch
    %25 = sbr.rel (0) target = $region21
  $region20: #{actor_forward.1} parent=0 // pred_region
    _
  $region21: #{actor_forward.1} parent=0 // pred_fallthru
    _
  // Predicated region
  $region22: #{actor_forward.1} parent=0 // pred_check
    _
  $region23: #{actor_forward.1} parent=0 // pred_check_branch
    %27 = sbr.rel (0) target = $region25
  $region24: #{actor_forward.1} parent=0 // pred_region
    _
  $region25: #{actor_forward.1} parent=0 // pred_fallthru
    _
  // Predicated region
  $region26: #{actor_forward.1} parent=0 // pred_check
    _
  $region27: #{actor_forward.1} parent=0 // pred_check_branch
    %29 = sbr.rel (0) target = $region29
  $region28: #{actor_forward.1} parent=0 // pred_region
    _
  $region29: #{actor_forward.1} parent=0 // pred_fallthru
    _
  // Predicated region
  $region30: #{actor_forward.1} parent=0 // pred_check
    _
  $region31: #{actor_forward.1} parent=0 // pred_check_branch
    %31 = sbr.rel (0) target = $region33
  $region32: #{actor_forward.1} parent=0 // pred_region
    _
  $region33: #{actor_forward.1} parent=0 // pred_fallthru
    _
  // Predicated region
  $region34: #{actor_forward.1} parent=0 // pred_check
    _
  $region35: #{actor_forward.1} parent=0 // pred_check_branch
    %33 = sbr.rel (0) target = $region37
  $region36: #{actor_forward.1} parent=0 // pred_region
    _
  $region37: #{actor_forward.1} parent=0 // pred_fallthru
    _
  // Predicated region
  $region38: #{actor_forward.1} parent=0 // pred_check
    _
  $region39: #{actor_forward.1} parent=0 // pred_check_branch
    %35 = sbr.rel (0) target = $region41
  $region40: #{actor_forward.1} parent=0 // pred_region
    _
  $region41: #{actor_forward.1} parent=0 // pred_fallthru
    _
  // Predicated region
  $region42: #{actor_forward.1} parent=0 // pred_check
    _
  $region43: #{actor_forward.1} parent=0 // pred_check_branch
    %37 = sbr.rel (0) target = $region45
  $region44: #{actor_forward.1} parent=0 // pred_region
    _
  $region45: #{actor_forward.1} parent=0 // pred_fallthru
    _
  %v39 = vld [vmem:[%s0] sm:$0xff]
  %v40 = vld [vmem:[%s1] sm:$0x3]
  %v41 = vld [vmem:[%s2] sm:$0x1]
  %v42 = vld [vmem:[%s3] sm:$0x1]
  %v43 = vld [vmem:[%s4] sm:$0x1]
  %v44 = vld [vmem:[%s6] sm:$0x1]
  %v45 = vld [vmem:[%s7] sm:$0x1]
  %v46 = vld [vmem:[%s8] sm:$0x1]
  %v47 = vld [vmem:[%s10] sm:$0x1]
  %49 = vset.pattern.permute.xlu0 0
  %50 = vperm.xlu0 %49, %v39
  %v51 = vpop.permute.xlu0 %50
  %v53 = vlaneseq
  %v54 = vshrl.u32 %v53, 7
  %v55 = vsub.s32 0, %v54
  %v56 = vrot.slane %v40, %v55
  %v57 = vmul.f32 %v51, %v56
  %58 = vset.pattern.permute.xlu0 1
  %59 = vperm.xlu0 %58, %v39
  %v60 = vpop.permute.xlu0 %59
  %v62 = vlaneseq
  %v63 = vshrl.u32 %v62, 7
  %v64 = vsub.s32 1, %v63
  %v65 = vrot.slane %v40, %v64
  %v66 = vmul.f32 %v60, %v65
  %v67 = vadd.f32 %v57, %v66
  %v69 = vlaneseq
  %v70 = vshrl.u32 %v69, 7
  %v71 = vsub.s32 0, %v70
  %v72 = vrot.slane %v41, %v71
  %v74 = vadd.f32 %v67, %v72
  %vm75 = vcmask 261120
  %v76 = vsel %vm75, %v74, 0.0
  %77 = vadd.xlane.f32.xlu0 %v76
  %v78 = vpop.xlane.xlu0 %77
  %v79 = vrcp.pop 32.0
  %v80 = vmul.f32 %v78, %v79
  %v81 = vsub.f32 %v74, %v80
  %v82 = vmul.f32 %v81, %v81
  %v83 = vsel %vm75, %v82, 0.0
  %84 = vadd.xlane.f32.xlu0 %v83
  %v85 = vpop.xlane.xlu0 %84
  %v86 = vmul.f32 %v85, %v79
  %v87 = vadd.f32 %v86, 1e-05
  %v88 = vrsqrt.pop %v87
  %v89 = vmul.f32 %v81, %v88
  %v91 = vlaneseq
  %v92 = vshrl.u32 %v91, 7
  %v93 = vsub.s32 0, %v92
  %v94 = vrot.slane %v42, %v93
  %v96 = vmul.f32 %v89, %v94
  %v98 = vlaneseq
  %v99 = vshrl.u32 %v98, 7
  %v100 = vsub.s32 0, %v99
  %v101 = vrot.slane %v43, %v100
  %v103 = vadd.f32 %v96, %v101
  %v104 = vmax.f32 %v103, 0.0
  %v105 = vpack.c.bf16 %v104, %v104
  %v106 = vld [vmem:[%s5] sm:$0xf]
  %v107 = vld [vmem:[%s5 + $0x4] sm:$0xf]
  %v108 = vld [vmem:[%s5 + $0x8] sm:$0xf]
  %v109 = vld [vmem:[%s5 + $0xc] sm:$0xf]
  %v111 = vlaneseq
  %v112 = vshrl.u32 %v111, 7
  %v113 = vsub.s32 0, %v112
  %v114 = vrot.slane %v44, %v113
  %v120 = vunpack.c.l.b16 %v106
  %v121 = vunpack.c.l.b16 %v107
  %v122 = vunpack.c.l.b16 %v108
  %v123 = vunpack.c.l.b16 %v109
  %v124 = vpack.c.b16 %v121, %v120
  %v125 = vpack.c.b16 %v123, %v122
  %v129 = vsel %vm75, %v105, 0
  %131 = vmatprep.subr.bf16.mxu0 0
  %132 = vmatpush1.bf16.msra.mxu0 %v124
  %133 = vmatprep.subr.bf16.mxu0 0
  %134 = vmatpush1.bf16.msra.mxu0 %v125
  %135 = vmatprep.subr.bf16.mxu0 0
  %136 = vmatpush1.bf16.msra.mxu0 0
  %137 = vmatprep.subr.bf16.mxu0 0
  %138 = vmatpush1.bf16.msra.mxu0 0
  %139 = vmatprep.subr.bf16.mxu0 0
  %140 = vmatpush1.bf16.msra.mxu0 0
  %141 = vmatprep.subr.bf16.mxu0 0
  %142 = vmatpush1.bf16.msra.mxu0 0
  %143 = vmatprep.subr.bf16.mxu0 0
  %144 = vmatpush1.bf16.msra.mxu0 0
  %145 = vmatprep.subr.bf16.mxu0 0
  %146 = vmatpush1.bf16.msra.mxu0 0
  %147 = vmatprep.subr.bf16.mxu0 0
  %148 = vmatpush1.bf16.msra.mxu0 0
  %149 = vmatprep.subr.bf16.mxu0 0
  %150 = vmatpush1.bf16.msra.mxu0 0
  %151 = vmatprep.subr.bf16.mxu0 0
  %152 = vmatpush1.bf16.msra.mxu0 0
  %153 = vmatprep.subr.bf16.mxu0 0
  %154 = vmatpush1.bf16.msra.mxu0 0
  %155 = vmatprep.subr.bf16.mxu0 0
  %156 = vmatpush1.bf16.msra.mxu0 0
  %157 = vmatprep.subr.bf16.mxu0 0
  %158 = vmatpush1.bf16.msra.mxu0 0
  %159 = vmatprep.subr.bf16.mxu0 0
  %160 = vmatpush1.bf16.msra.mxu0 0
  %161 = vmatprep.subr.bf16.mxu0 0
  %162 = vmatpush1.bf16.msra.mxu0 0
  %163 = vmatprep.mubr.bf16.mxu0 0
  %164 = vmatmul.mubr.bf16.gmra.mrb[0].mxu0 %v129
  %v165 = vpop.f32.mrb[0].mxu0
  %v166 = vadd.f32 %v114, %v165
  %v167 = vpop.f32.mrb[0].mxu0
  %v168 = vpop.f32.mrb[0].mxu0
  %v169 = vpop.f32.mrb[0].mxu0
  %170 = vdwg.mxu0
  %v171 = vsel %vm75, %v166, 0.0
  %172 = vadd.xlane.f32.xlu0 %v171
  %v173 = vpop.xlane.xlu0 %172
  %v174 = vmul.f32 %v173, %v79
  %v175 = vsub.f32 %v166, %v174
  %v176 = vmul.f32 %v175, %v175
  %v177 = vsel %vm75, %v176, 0.0
  %178 = vadd.xlane.f32.xlu0 %v177
  %v179 = vpop.xlane.xlu0 %178
  %v180 = vmul.f32 %v179, %v79
  %v181 = vadd.f32 %v180, 1e-05
  %v182 = vrsqrt.pop %v181
  %v183 = vmul.f32 %v175, %v182
  %v185 = vlaneseq
  %v186 = vshrl.u32 %v185, 7
  %v187 = vsub.s32 0, %v186
  %v188 = vrot.slane %v45, %v187
  %v190 = vmul.f32 %v183, %v188
  %v192 = vlaneseq
  %v193 = vshrl.u32 %v192, 7
  %v194 = vsub.s32 0, %v193
  %v195 = vrot.slane %v46, %v194
  %v197 = vadd.f32 %v190, %v195
  %v198 = vmax.f32 %v197, 0.0
  %v199 = vpack.c.bf16 %v198, %v198
  %v200 = vld [vmem:[%s9] sm:$0xf]
  %v201 = vld [vmem:[%s9 + $0x4] sm:$0xf]
  %v202 = vld [vmem:[%s9 + $0x8] sm:$0xf]
  %v203 = vld [vmem:[%s9 + $0xc] sm:$0xf]
  %v205 = vlaneseq
  %v206 = vshrl.u32 %v205, 7
  %v207 = vsub.s32 0, %v206
  %v208 = vrot.slane %v47, %v207
  %v214 = vunpack.c.l.b16 %v200
  %v215 = vunpack.c.l.b16 %v201
  %v216 = vunpack.c.l.b16 %v202
  %v217 = vunpack.c.l.b16 %v203
  %v218 = vpack.c.b16 %v215, %v214
  %v219 = vpack.c.b16 %v217, %v216
  %v223 = vsel %vm75, %v199, 0
  %225 = vmatprep.subr.bf16.mxu0 0
  %226 = vmatpush1.bf16.msra.mxu0 %v218
  %227 = vmatprep.subr.bf16.mxu0 0
  %228 = vmatpush1.bf16.msra.mxu0 %v219
  %229 = vmatprep.subr.bf16.mxu0 0
  %230 = vmatpush1.bf16.msra.mxu0 0
  %231 = vmatprep.subr.bf16.mxu0 0
  %232 = vmatpush1.bf16.msra.mxu0 0
  %233 = vmatprep.subr.bf16.mxu0 0
  %234 = vmatpush1.bf16.msra.mxu0 0
  %235 = vmatprep.subr.bf16.mxu0 0
  %236 = vmatpush1.bf16.msra.mxu0 0
  %237 = vmatprep.subr.bf16.mxu0 0
  %238 = vmatpush1.bf16.msra.mxu0 0
  %239 = vmatprep.subr.bf16.mxu0 0
  %240 = vmatpush1.bf16.msra.mxu0 0
  %241 = vmatprep.subr.bf16.mxu0 0
  %242 = vmatpush1.bf16.msra.mxu0 0
  %243 = vmatprep.subr.bf16.mxu0 0
  %244 = vmatpush1.bf16.msra.mxu0 0
  %245 = vmatprep.subr.bf16.mxu0 0
  %246 = vmatpush1.bf16.msra.mxu0 0
  %247 = vmatprep.subr.bf16.mxu0 0
  %248 = vmatpush1.bf16.msra.mxu0 0
  %249 = vmatprep.subr.bf16.mxu0 0
  %250 = vmatpush1.bf16.msra.mxu0 0
  %251 = vmatprep.subr.bf16.mxu0 0
  %252 = vmatpush1.bf16.msra.mxu0 0
  %253 = vmatprep.subr.bf16.mxu0 0
  %254 = vmatpush1.bf16.msra.mxu0 0
  %255 = vmatprep.subr.bf16.mxu0 0
  %256 = vmatpush1.bf16.msra.mxu0 0
  %257 = vmatprep.mubr.bf16.mxu0 0
  %258 = vmatmul.mubr.bf16.gmra.mrb[0].mxu0 %v223
  %v259 = vpop.f32.mrb[0].mxu0
  %v260 = vadd.f32 %v208, %v259
  %v261 = vpop.f32.mrb[0].mxu0
  %v262 = vpop.f32.mrb[0].mxu0
  %v263 = vpop.f32.mrb[0].mxu0
  %264 = vdwg.mxu0
  %v265 = vtanh.pop %v260
  %266 = vst [vmem:[%s11] sm:$0xff] %v265
  // Predicated region
  $region46: #{actor_forward.1} parent=0 // pred_check
    _
  $region47: #{actor_forward.1} parent=0 // pred_check_branch
    %268 = sbr.rel (0) target = $region49
  $region48: #{actor_forward.1} parent=0 // pred_region
    _
  $region49: #{actor_forward.1} parent=0 // pred_fallthru
    _
  // Predicated region
  $region50: #{actor_forward.1} parent=0 // pred_check
    _
  $region51: #{actor_forward.1} parent=0 // pred_check_branch
    %270 = sbr.rel (0) target = $region53
  $region52: #{actor_forward.1} parent=0 // pred_region
    _
  $region53: #{actor_forward.1} parent=0 // pred_fallthru
    _

</llo_original>
